<compile_context>
chip_gen: v7x
topology: tpu7x:2x2x1
jax: 0.10.0
libtpu: 0.0.40
codegen_flags: <defaults>
</compile_context>

<pallas_src>
import functools

import jax
import jax.numpy as jnp
from jax.experimental import pallas as pl
from jax.experimental.pallas import tpu as pltpu

_SUB_CONST = 10.0
_SMALL_BYTES = 2 << 20          # <= 2 MiB: whole problem is a single VMEM tile
_TARGET_BLOCK_BYTES = 1 << 20   # ~1 MiB per pipelined block in the tiled path


def _sub_const_kernel(x_ref, o_ref):
    # Elementwise hot path: v2 = x2 - 10.0
    o_ref[...] = x_ref[...] - _SUB_CONST


def _pick_lane_width(n: int):
    """Widest lane dim (multiple of 128) that divides n; else pad to 128."""
    for lane in (1024, 512, 256, 128):
        if n % lane == 0:
            return lane, False
    return 128, True


@jax.jit
def model_forward(x2: jax.Array) -> jax.Array:
    """Pallas implementation of: v2 = x2 - 10.0 (NCHW float32)."""
    orig_shape = x2.shape
    dtype = x2.dtype
    n = x2.size

    lane, needs_pad = _pick_lane_width(n)
    x_flat = jnp.ravel(x2)
    if needs_pad:
        padded = pl.cdiv(n, lane) * lane
        # Only reached for sizes not divisible by 128 (not this module's shape).
        x_flat = jnp.pad(x_flat, (0, padded - n))
    else:
        padded = n
    rows = padded // lane
    x2d = x_flat.reshape(rows, lane)

    itemsize = jnp.dtype(dtype).itemsize
    total_bytes = padded * itemsize
    cost = pl.CostEstimate(
        flops=padded, transcendentals=0, bytes_accessed=2 * total_bytes
    )

    if total_bytes <= _SMALL_BYTES:
        # ---- small-input fast path: single un-tiled VMEM block, no grid ----
        out2d = pl.pallas_call(
            _sub_const_kernel,
            out_shape=jax.ShapeDtypeStruct((rows, lane), dtype),
            in_specs=[pl.BlockSpec(memory_space=pltpu.MemorySpace.VMEM)],
            out_specs=pl.BlockSpec(memory_space=pltpu.MemorySpace.VMEM),
            cost_estimate=cost,
        )(x2d)
    else:
        # ---- large-input path: tiled, mem-bound elementwise ----
        block_rows = max(8, _TARGET_BLOCK_BYTES // (lane * itemsize))
        block_rows = min(block_rows, rows)
        block_rows = max(8, (block_rows // 8) * 8)
        grid = (pl.cdiv(rows, block_rows),)  # partial last block is masked
        out2d = pl.pallas_call(
            _sub_const_kernel,
            out_shape=jax.ShapeDtypeStruct((rows, lane), dtype),
            grid=grid,
            in_specs=[pl.BlockSpec((block_rows, lane), lambda i: (i, 0))],
            out_specs=pl.BlockSpec((block_rows, lane), lambda i: (i, 0)),
            cost_estimate=cost,
            compiler_params=pltpu.CompilerParams(
                dimension_semantics=("parallel",),
                # 2 buffers x (in + out) x ~1 MiB ~= 4 MiB, far under limits
                # on v5e/v6e (128 MiB) and v7x (64 MiB).
                vmem_limit_bytes=32 << 20,
            ),
        )(x2d)

    out_flat = out2d.reshape(-1)
    if needs_pad:
        out_flat = out_flat[:n]
    return out_flat.reshape(orig_shape)


if __name__ == "__main__":
    key = jax.random.PRNGKey(0)
    # matches the module's example input: torch.randn(1, 3, 64, 64)
    x2 = jax.random.normal(key, (1, 3, 64, 64), dtype=jnp.float32)

    out = model_forward(x2)
    out = jax.block_until_ready(out)

    # correctness check against plain-JAX reference
    ref = x2 - 10.0
    assert out.shape == ref.shape and out.dtype == ref.dtype
    assert jnp.allclose(out, ref, atol=1e-6, rtol=1e-6)

    print("KERNEL_OK")
</pallas_src>

<mosaic_0001>
module attributes {stable_mosaic.version = 11 : i64} {
  func.func @_sub_const_kernel(%arg0: memref<12x1024xf32, #tpu.memory_space<vmem>>, %arg1: memref<12x1024xf32, #tpu.memory_space<vmem>>) attributes {dimension_semantics = [], scalar_prefetch = 0 : i64, scratch_operands = 0 : i64, tpu.core_type = #tpu.core_type<tc>} {
    %c0 = arith.constant 0 : index
    %c0_0 = arith.constant 0 : index
    %0 = vector.load %arg0[%c0, %c0_0] : memref<12x1024xf32, #tpu.memory_space<vmem>>, vector<12x1024xf32>
    %cst = arith.constant 1.000000e+01 : f32
    %1 = vector.broadcast %cst : f32 to vector<12x1024xf32>
    %2 = arith.subf %0, %1 : vector<12x1024xf32>
    %c0_1 = arith.constant 0 : index
    %c0_2 = arith.constant 0 : index
    %3 = vector.load %arg1[%c0_1, %c0_2] : memref<12x1024xf32, #tpu.memory_space<vmem>>, vector<12x1024xf32>
    tpu.vector_store %arg1[%c0_1, %c0_2], %2 {strides = array<i32>} : memref<12x1024xf32, #tpu.memory_space<vmem>>, vector<12x1024xf32>,
    return
  }
}

</mosaic_0001>

<llo_original>
// kernel: model_forward.1
$region0: #{model_forward.1}
  #allocation0 [shape = 'u32[]', space=smem, size = 0x4, offset = 0x4, fixed_abs, tag = 'smem constant byte address 0x4 - core index']
  #allocation1 [shape = 'u32[144,128]{1,0:T(1,128)}', space=vmem, size = 0x12000, scoped, tag = 'internal scratch']
  %s0 = inlined_call_operand.vmem [shape: f32[12,1024], index: 0, kind: input, shape index: {}]
  %s1 = inlined_call_operand.vmem [shape: f32[12,1024], index: 1, kind: output, shape index: {}]
  %s2 = sld [smem:[#allocation0]]
  $region14: #{model_forward.1} parent=0
    _
  %s4 = ssub.s32 1, %s2
  %s5 = scalar_select 0, %s4, %s2
  // Predicated region
  $region2: #{model_forward.1} parent=0 // pred_check
    _
  $region3: #{model_forward.1} parent=0 // pred_check_branch
    %7 = sbr.rel (0) target = $region5
  $region4: #{model_forward.1} parent=0 // pred_region
    _
  $region5: #{model_forward.1} parent=0 // pred_fallthru
    _
  %v8 = vld [vmem:[%s0] sm:$0xff]
  %v9 = vld [vmem:[%s0 + $0x8] sm:$0xff]
  %v10 = vld [vmem:[%s0 + $0x10] sm:$0xff]
  %v11 = vld [vmem:[%s0 + $0x18] sm:$0xff]
  %v12 = vld [vmem:[%s0 + $0x20] sm:$0xff]
  %v13 = vld [vmem:[%s0 + $0x28] sm:$0xff]
  %v14 = vld [vmem:[%s0 + $0x30] sm:$0xff]
  %v15 = vld [vmem:[%s0 + $0x38] sm:$0xff]
  %v16 = vld [vmem:[%s0 + $0x40] sm:$0xf]
  %v17 = vld [vmem:[%s0 + $0x48] sm:$0xf]
  %v18 = vld [vmem:[%s0 + $0x50] sm:$0xf]
  %v19 = vld [vmem:[%s0 + $0x58] sm:$0xf]
  %v20 = vld [vmem:[%s0 + $0x60] sm:$0xf]
  %v21 = vld [vmem:[%s0 + $0x68] sm:$0xf]
  %v22 = vld [vmem:[%s0 + $0x70] sm:$0xf]
  %v23 = vld [vmem:[%s0 + $0x78] sm:$0xf]
  %v24 = vsub.f32 %v8, 10.0
  %v25 = vsub.f32 %v9, 10.0
  %v26 = vsub.f32 %v10, 10.0
  %v27 = vsub.f32 %v11, 10.0
  %v28 = vsub.f32 %v12, 10.0
  %v29 = vsub.f32 %v13, 10.0
  %v30 = vsub.f32 %v14, 10.0
  %v31 = vsub.f32 %v15, 10.0
  %v32 = vsub.f32 %v16, 10.0
  %v33 = vsub.f32 %v17, 10.0
  %v34 = vsub.f32 %v18, 10.0
  %v35 = vsub.f32 %v19, 10.0
  %v36 = vsub.f32 %v20, 10.0
  %v37 = vsub.f32 %v21, 10.0
  %v38 = vsub.f32 %v22, 10.0
  %v39 = vsub.f32 %v23, 10.0
  %40 = vst [vmem:[%s1] sm:$0xff] %v24
  %41 = vst [vmem:[%s1 + $0x8] sm:$0xff] %v25
  %42 = vst [vmem:[%s1 + $0x10] sm:$0xff] %v26
  %43 = vst [vmem:[%s1 + $0x18] sm:$0xff] %v27
  %44 = vst [vmem:[%s1 + $0x20] sm:$0xff] %v28
  %45 = vst [vmem:[%s1 + $0x28] sm:$0xff] %v29
  %46 = vst [vmem:[%s1 + $0x30] sm:$0xff] %v30
  %47 = vst [vmem:[%s1 + $0x38] sm:$0xff] %v31
  %48 = vst [vmem:[%s1 + $0x40] sm:$0xf] %v32
  %49 = vst [vmem:[%s1 + $0x48] sm:$0xf] %v33
  %50 = vst [vmem:[%s1 + $0x50] sm:$0xf] %v34
  %51 = vst [vmem:[%s1 + $0x58] sm:$0xf] %v35
  %52 = vst [vmem:[%s1 + $0x60] sm:$0xf] %v36
  %53 = vst [vmem:[%s1 + $0x68] sm:$0xf] %v37
  %54 = vst [vmem:[%s1 + $0x70] sm:$0xf] %v38
  %55 = vst [vmem:[%s1 + $0x78] sm:$0xf] %v39
  // Predicated region
  $region6: #{model_forward.1} parent=0 // pred_check
    _
  $region7: #{model_forward.1} parent=0 // pred_check_branch
    %57 = sbr.rel (0) target = $region9
  $region8: #{model_forward.1} parent=0 // pred_region
    _
  $region9: #{model_forward.1} parent=0 // pred_fallthru
    _
  // Predicated region
  $region10: #{model_forward.1} parent=0 // pred_check
    _
  $region11: #{model_forward.1} parent=0 // pred_check_branch
    %59 = sbr.rel (0) target = $region13
  $region12: #{model_forward.1} parent=0 // pred_region
    _
  $region13: #{model_forward.1} parent=0 // pred_fallthru
    _

</llo_original>
